<compile_context>
chip_gen: v5e
topology: v5e:2x2
jax: 0.10.0
libtpu: 0.0.40
codegen_flags: <defaults>
</compile_context>

<pallas_src>
import functools

import numpy as np
import jax
import jax.numpy as jnp
from jax import lax
from jax.experimental import pallas as pl
from jax.experimental.pallas import tpu as pltpu  # noqa: F401

IN_FEATS = 16
OUT_FEATS = 8
NUM_HEADS = 4
N_NODES = 16
HF = NUM_HEADS * OUT_FEATS


def _gat_kernel(x_ref, adjr_ref, w1_ref, adst_ref, asrc_ref, aggm_ref,
                expf_ref, w2_ref, bn_ref, out_ref, *, num_heads, out_feats, n):
    hf = num_heads * out_feats
    x = x_ref[...]                                       # [N, Cin]

    # --- GATConv ---------------------------------------------------------
    xw = jnp.dot(x, w1_ref[...], preferred_element_type=jnp.float32)        # [N, H*F]

    # attention coefficients via two fused block-diagonal matmuls
    d_cols = jnp.dot(xw, adst_ref[...], preferred_element_type=jnp.float32)  # [N, H]  alpha_dst
    s_rows = lax.dot_general(asrc_ref[...], xw, (((1,), (1,)), ((), ())),
                             preferred_element_type=jnp.float32)             # [H, N]  alpha_src

    # lane-stacked logits: column block h (N lanes wide) is head h's [N, N] logits
    logits = jnp.concatenate(
        [d_cols[:, h:h + 1] + s_rows[h:h + 1, :] for h in range(num_heads)],
        axis=1)                                                              # [N, H*N]
    logits = jnp.where(logits >= 0, logits, 0.2 * logits)                    # LeakyReLU(0.2)
    logits = jnp.where(adjr_ref[...] > 0, logits, jnp.float32(-1e30))        # edge mask
    # softmax is shift-invariant per head block, so a single row-global max is
    # a valid stabilizer (every block contains a finite self-loop entry).
    m = jnp.max(logits, axis=1, keepdims=True)                               # [N, 1]
    p = jnp.exp(logits - m)                                                  # masked -> 0

    # one block-diagonal aggregation matmul:
    #   rhs[h*N+j, 0:H*F]  = xw[j, :] masked to head-h's column block
    #   rhs[h*N+j, H*F+h]  = 1        (softmax denominator indicator)
    xw_ext = jnp.concatenate(
        [xw, jnp.ones((n, num_heads), jnp.float32)], axis=1)                 # [N, H*F+H]
    rhs = jnp.concatenate([xw_ext] * num_heads, axis=0) * aggm_ref[...]      # [H*N, H*F+H]
    agg = jnp.dot(p, rhs, preferred_element_type=jnp.float32)                # [N, H*F+H]
    inv = 1.0 / agg[:, hf:hf + num_heads]                                    # exact divide
    h1 = agg[:, :hf] * jnp.dot(inv, expf_ref[...],
                               preferred_element_type=jnp.float32)           # [N, H*F]
    # GATConv bias omitted: it is cancelled (up to fp rounding) by the
    # training-mode BatchNorm mean subtraction below.

    # --- BatchNorm1 (batch stats, eps=1e-5) + ReLU -------------------------
    g1 = bn_ref[0:1, :]
    be1 = bn_ref[1:2, :]
    mean1 = jnp.mean(h1, axis=0, keepdims=True)
    var1 = jnp.mean((h1 - mean1) ** 2, axis=0, keepdims=True)
    h1 = (h1 - mean1) * lax.rsqrt(var1 + 1e-5) * g1 + be1
    h1 = jnp.maximum(h1, 0.0)

    # --- Linear [N, H*F] @ [H*F, F] (bias cancelled by BatchNorm2) ---------
    h2 = jnp.dot(h1, w2_ref[...], preferred_element_type=jnp.float32)

    # --- BatchNorm2 + ReLU --------------------------------------------------
    g2 = bn_ref[2:3, 0:out_feats]
    be2 = bn_ref[3:4, 0:out_feats]
    mean2 = jnp.mean(h2, axis=0, keepdims=True)
    var2 = jnp.mean((h2 - mean2) ** 2, axis=0, keepdims=True)
    h2 = (h2 - mean2) * lax.rsqrt(var2 + 1e-5) * g2 + be2
    out_ref[...] = jnp.maximum(h2, 0.0)


def _pack_operands(params, edge_index, n):
    """One-time packing of graph structure + parameters (NOT in the hot path)."""
    num_heads, out_feats = NUM_HEADS, OUT_FEATS
    hf = num_heads * out_feats

    # dense adjacency adj[dst, src] with self-loops (GATConv default
    # remove_self_loops + add_self_loops), tiled along lanes per head.
    adj = jnp.zeros((n, n), jnp.float32).at[edge_index[1], edge_index[0]].set(1.0)
    adj = jnp.maximum(adj, jnp.eye(n, dtype=jnp.float32))
    adj_rep = jnp.tile(adj, (1, num_heads))                                  # [N, H*N]

    # block-diagonal attention operands
    eye_h = jnp.eye(num_heads, dtype=jnp.float32)
    adst_blk = (params["att_dst"][:, :, None] * eye_h[:, None, :]).reshape(hf, num_heads)
    asrc_blk = (eye_h[:, :, None] * params["att_src"][None, :, :]).reshape(num_heads, hf)

    # block-diagonal mask for the fused aggregation matmul (+ denominator cols)
    # and the head->feature-block expansion matrix for the normalization.
    aggm = np.zeros((num_heads * n, hf + num_heads), np.float32)
    expf = np.zeros((num_heads, hf), np.float32)
    for h in range(num_heads):
        aggm[h * n:(h + 1) * n, h * out_feats:(h + 1) * out_feats] = 1.0
        aggm[h * n:(h + 1) * n, hf + h] = 1.0
        expf[h, h * out_feats:(h + 1) * out_feats] = 1.0

    # four BatchNorm vectors packed into one [4, H*F] operand
    pad = lambda v: jnp.pad(v, (0, hf - v.shape[0]))
    bn_pack = jnp.stack([params["g1"], params["be1"],
                         pad(params["g2"]), pad(params["be2"])], axis=0)

    return (adj_rep, params["w1"], adst_blk, asrc_blk,
            jnp.asarray(aggm), jnp.asarray(expf), params["w2"], bn_pack)


def make_gat_forward(params, edge_index, n=N_NODES):
    """Build forward(x) with all packing hoisted out of the per-call hot path."""
    packed = jax.device_put(_pack_operands(params, edge_index, n))
    kernel = functools.partial(_gat_kernel, num_heads=NUM_HEADS,
                               out_feats=OUT_FEATS, n=n)
    # Gridless call: all (tiny) arrays live in VMEM, no pipeline overhead.
    call = pl.pallas_call(
        kernel,
        out_shape=jax.ShapeDtypeStruct((n, OUT_FEATS), jnp.float32),
    )

    @jax.jit
    def forward(x):
        return call(x, *packed)

    return forward


def gat_forward(x, edge_index, edge_attr, params):
    # TODO(synk): edge_attr is accepted but unused — PyG GATConv built with
    # edge_dim=None ignores edge_attr in message passing.
    del edge_attr
    return make_gat_forward(params, edge_index, x.shape[0])(x)


def init_params(key):
    ks = jax.random.split(key, 4)
    return {
        # GATConv.lin weight, stored transposed as [in, heads*out]
        "w1": jax.random.normal(ks[0], (IN_FEATS, HF), jnp.float32) * 0.2,
        # GATConv attention vectors att_src / att_dst: [heads, out]
        "att_src": jax.random.normal(ks[1], (NUM_HEADS, OUT_FEATS), jnp.float32) * 0.2,
        "att_dst": jax.random.normal(ks[2], (NUM_HEADS, OUT_FEATS), jnp.float32) * 0.2,
        # BatchNorm1 affine params (init: gamma=1, beta=0)
        "g1": jnp.ones((HF,), jnp.float32),
        "be1": jnp.zeros((HF,), jnp.float32),
        # Linear weight stored transposed as [heads*out, out]
        "w2": jax.random.normal(ks[3], (HF, OUT_FEATS), jnp.float32) * 0.2,
        # BatchNorm2 affine params
        "g2": jnp.ones((OUT_FEATS,), jnp.float32),
        "be2": jnp.zeros((OUT_FEATS,), jnp.float32),
        # GATConv bias / Linear bias intentionally omitted: with training-mode
        # BatchNorm immediately after, a per-column bias is cancelled by the
        # batch-mean subtraction (exact in real arithmetic, ~ULP-level in fp32).
    }


if __name__ == "__main__":
    key = jax.random.PRNGKey(0)
    kx, kp = jax.random.split(key)

    x = jax.random.normal(kx, (N_NODES, IN_FEATS), jnp.float32)

    # deterministic graph: bidirectional ring + forward chords of stride 3
    src = jnp.arange(N_NODES, dtype=jnp.int32)
    dst = (src + 1) % N_NODES
    edge_index = jnp.stack(
        [jnp.concatenate([src, dst, src]),
         jnp.concatenate([dst, src, (src + 3) % N_NODES])], axis=0)
    edge_attr = jnp.ones((edge_index.shape[1], 4), jnp.float32)  # unused (edge_dim=None)

    params = init_params(kp)

    # packing hoisted: built once here, reused for every subsequent call
    forward = make_gat_forward(params, edge_index, N_NODES)
    out = forward(x)
    jax.block_until_ready(out)
    assert out.shape == (N_NODES, OUT_FEATS)
    print("KERNEL_OK")
</pallas_src>

<mosaic_0001>
module attributes {stable_mosaic.version = 11 : i64} {
  func.func @_gat_kernel(%arg0: memref<16x16xf32, #tpu.memory_space<vmem>>, %arg1: memref<16x64xf32, #tpu.memory_space<vmem>>, %arg2: memref<16x32xf32, #tpu.memory_space<vmem>>, %arg3: memref<32x4xf32, #tpu.memory_space<vmem>>, %arg4: memref<4x32xf32, #tpu.memory_space<vmem>>, %arg5: memref<64x36xf32, #tpu.memory_space<vmem>>, %arg6: memref<4x32xf32, #tpu.memory_space<vmem>>, %arg7: memref<32x8xf32, #tpu.memory_space<vmem>>, %arg8: memref<4x32xf32, #tpu.memory_space<vmem>>, %arg9: memref<16x8xf32, #tpu.memory_space<vmem>>) attributes {dimension_semantics = [], scalar_prefetch = 0 : i64, scratch_operands = 0 : i64, tpu.core_type = #tpu.core_type<tc>} {
    %c0 = arith.constant 0 : index
    %c0_0 = arith.constant 0 : index
    %0 = vector.load %arg0[%c0, %c0_0] : memref<16x16xf32, #tpu.memory_space<vmem>>, vector<16x16xf32>
    %c0_1 = arith.constant 0 : index
    %c0_2 = arith.constant 0 : index
    %1 = vector.load %arg2[%c0_1, %c0_2] : memref<16x32xf32, #tpu.memory_space<vmem>>, vector<16x32xf32>
    %cst = arith.constant dense<0.000000e+00> : vector<16x32xf32>
    %2 = tpu.matmul %0, %1, %cst {dimension_numbers = #tpu.dot_dimension_numbers<[1], [0], [0], [1], [0, 0, 1, 1], [], []>} : vector<16x16xf32>, vector<16x32xf32>, vector<16x32xf32> -> vector<16x32xf32>
    %c0_3 = arith.constant 0 : index
    %c0_4 = arith.constant 0 : index
    %3 = vector.load %arg3[%c0_3, %c0_4] : memref<32x4xf32, #tpu.memory_space<vmem>>, vector<32x4xf32>
    %cst_5 = arith.constant dense<0.000000e+00> : vector<16x4xf32>
    %4 = tpu.matmul %2, %3, %cst_5 {dimension_numbers = #tpu.dot_dimension_numbers<[1], [0], [0], [1], [0, 0, 1, 1], [], []>} : vector<16x32xf32>, vector<32x4xf32>, vector<16x4xf32> -> vector<16x4xf32>
    %c0_6 = arith.constant 0 : index
    %c0_7 = arith.constant 0 : index
    %5 = vector.load %arg4[%c0_6, %c0_7] : memref<4x32xf32, #tpu.memory_space<vmem>>, vector<4x32xf32>
    %cst_8 = arith.constant dense<0.000000e+00> : vector<4x16xf32>
    %6 = tpu.matmul %5, %2, %cst_8 {dimension_numbers = #tpu.dot_dimension_numbers<[1], [1], [0], [0], [0, 0, 1, 0], [], []>} : vector<4x32xf32>, vector<16x32xf32>, vector<4x16xf32> -> vector<4x16xf32>
    %7 = vector.extract_strided_slice %4 {offsets = [0, 0], sizes = [16, 1], strides = [1, 1]} : vector<16x4xf32> to vector<16x1xf32>
    %8 = vector.extract_strided_slice %6 {offsets = [0, 0], sizes = [1, 16], strides = [1, 1]} : vector<4x16xf32> to vector<1x16xf32>
    %9 = vector.broadcast %7 : vector<16x1xf32> to vector<16x16xf32>
    %10 = vector.broadcast %8 : vector<1x16xf32> to vector<16x16xf32>
    %11 = arith.addf %9, %10 : vector<16x16xf32>
    %12 = vector.extract_strided_slice %4 {offsets = [0, 1], sizes = [16, 1], strides = [1, 1]} : vector<16x4xf32> to vector<16x1xf32>
    %13 = vector.extract_strided_slice %6 {offsets = [1, 0], sizes = [1, 16], strides = [1, 1]} : vector<4x16xf32> to vector<1x16xf32>
    %14 = vector.broadcast %12 : vector<16x1xf32> to vector<16x16xf32>
    %15 = vector.broadcast %13 : vector<1x16xf32> to vector<16x16xf32>
    %16 = arith.addf %14, %15 : vector<16x16xf32>
    %17 = vector.extract_strided_slice %4 {offsets = [0, 2], sizes = [16, 1], strides = [1, 1]} : vector<16x4xf32> to vector<16x1xf32>
    %18 = vector.extract_strided_slice %6 {offsets = [2, 0], sizes = [1, 16], strides = [1, 1]} : vector<4x16xf32> to vector<1x16xf32>
    %19 = vector.broadcast %17 : vector<16x1xf32> to vector<16x16xf32>
    %20 = vector.broadcast %18 : vector<1x16xf32> to vector<16x16xf32>
    %21 = arith.addf %19, %20 : vector<16x16xf32>
    %22 = vector.extract_strided_slice %4 {offsets = [0, 3], sizes = [16, 1], strides = [1, 1]} : vector<16x4xf32> to vector<16x1xf32>
    %23 = vector.extract_strided_slice %6 {offsets = [3, 0], sizes = [1, 16], strides = [1, 1]} : vector<4x16xf32> to vector<1x16xf32>
    %24 = vector.broadcast %22 : vector<16x1xf32> to vector<16x16xf32>
    %25 = vector.broadcast %23 : vector<1x16xf32> to vector<16x16xf32>
    %26 = arith.addf %24, %25 : vector<16x16xf32>
    %27 = tpu.concatenate %11, %16, %21, %26 in 1 : vector<16x16xf32>, vector<16x16xf32>, vector<16x16xf32>, vector<16x16xf32> -> vector<16x64xf32>
    %cst_9 = arith.constant 0.000000e+00 : f32
    %28 = vector.broadcast %cst_9 : f32 to vector<16x64xf32>
    %29 = arith.cmpf oge, %27, %28 : vector<16x64xf32>
    %cst_10 = arith.constant 2.000000e-01 : f32
    %30 = vector.broadcast %cst_10 : f32 to vector<16x64xf32>
    %31 = arith.mulf %30, %27 : vector<16x64xf32>
    %32 = arith.select %29, %27, %31 : vector<16x64xi1>, vector<16x64xf32>
    %c0_11 = arith.constant 0 : index
    %c0_12 = arith.constant 0 : index
    %33 = vector.load %arg1[%c0_11, %c0_12] : memref<16x64xf32, #tpu.memory_space<vmem>>, vector<16x64xf32>
    %cst_13 = arith.constant 0.000000e+00 : f32
    %34 = vector.broadcast %cst_13 : f32 to vector<16x64xf32>
    %35 = arith.cmpf ogt, %33, %34 : vector<16x64xf32>
    %cst_14 = arith.constant -1.000000e+30 : f32
    %36 = vector.broadcast %cst_14 : f32 to vector<16x64xf32>
    %37 = arith.select %35, %32, %36 : vector<16x64xi1>, vector<16x64xf32>
    %cst_15 = arith.constant dense<0xFF800000> : vector<16xf32>
    %38 = vector.multi_reduction <maximumf>, %37, %cst_15 [1] : vector<16x64xf32> to vector<16xf32>
    %39 = vector.shape_cast %38 : vector<16xf32> to vector<16x1xf32>
    %40 = vector.broadcast %39 : vector<16x1xf32> to vector<16x64xf32>
    %41 = arith.subf %37, %40 : vector<16x64xf32>
    %42 = math.exp %41 : vector<16x64xf32>
    %cst_16 = arith.constant 1.000000e+00 : f32
    %43 = vector.broadcast %cst_16 : f32 to vector<16x4xf32>
    %44 = tpu.concatenate %2, %43 in 1 : vector<16x32xf32>, vector<16x4xf32> -> vector<16x36xf32>
    %45 = tpu.concatenate %44, %44, %44, %44 in 0 : vector<16x36xf32>, vector<16x36xf32>, vector<16x36xf32>, vector<16x36xf32> -> vector<64x36xf32>
    %c0_17 = arith.constant 0 : index
    %c0_18 = arith.constant 0 : index
    %46 = vector.load %arg5[%c0_17, %c0_18] : memref<64x36xf32, #tpu.memory_space<vmem>>, vector<64x36xf32>
    %47 = arith.mulf %45, %46 : vector<64x36xf32>
    %cst_19 = arith.constant dense<0.000000e+00> : vector<16x36xf32>
    %48 = tpu.matmul %42, %47, %cst_19 {dimension_numbers = #tpu.dot_dimension_numbers<[1], [0], [0], [1], [0, 0, 1, 1], [], []>} : vector<16x64xf32>, vector<64x36xf32>, vector<16x36xf32> -> vector<16x36xf32>
    %49 = vector.extract_strided_slice %48 {offsets = [0, 32], sizes = [16, 4], strides = [1, 1]} : vector<16x36xf32> to vector<16x4xf32>
    %cst_20 = arith.constant 1.000000e+00 : f32
    %50 = vector.broadcast %cst_20 : f32 to vector<16x4xf32>
    %51 = arith.divf %50, %49 : vector<16x4xf32>
    %52 = vector.extract_strided_slice %48 {offsets = [0, 0], sizes = [16, 32], strides = [1, 1]} : vector<16x36xf32> to vector<16x32xf32>
    %c0_21 = arith.constant 0 : index
    %c0_22 = arith.constant 0 : index
    %53 = vector.load %arg6[%c0_21, %c0_22] : memref<4x32xf32, #tpu.memory_space<vmem>>, vector<4x32xf32>
    %cst_23 = arith.constant dense<0.000000e+00> : vector<16x32xf32>
    %54 = tpu.matmul %51, %53, %cst_23 {dimension_numbers = #tpu.dot_dimension_numbers<[1], [0], [0], [1], [0, 0, 1, 1], [], []>} : vector<16x4xf32>, vector<4x32xf32>, vector<16x32xf32> -> vector<16x32xf32>
    %55 = arith.mulf %52, %54 : vector<16x32xf32>
    %c0_24 = arith.constant 0 : index
    %c0_25 = arith.constant 0 : index
    %56 = vector.load %arg8[%c0_24, %c0_25] : memref<4x32xf32, #tpu.memory_space<vmem>>, vector<1x32xf32>
    %c1 = arith.constant 1 : index
    %c0_26 = arith.constant 0 : index
    %57 = vector.load %arg8[%c1, %c0_26] : memref<4x32xf32, #tpu.memory_space<vmem>>, vector<1x32xf32>
    %cst_27 = arith.constant dense<0.000000e+00> : vector<32xf32>
    %58 = vector.multi_reduction <add>, %55, %cst_27 [0] : vector<16x32xf32> to vector<32xf32>
    %59 = vector.shape_cast %58 : vector<32xf32> to vector<1x32xf32>
    %cst_28 = arith.constant 1.600000e+01 : f32
    %60 = vector.broadcast %cst_28 : f32 to vector<1x32xf32>
    %61 = arith.divf %59, %60 : vector<1x32xf32>
    %62 = vector.broadcast %61 : vector<1x32xf32> to vector<16x32xf32>
    %63 = arith.subf %55, %62 : vector<16x32xf32>
    %64 = arith.mulf %63, %63 : vector<16x32xf32>
    %cst_29 = arith.constant dense<0.000000e+00> : vector<32xf32>
    %65 = vector.multi_reduction <add>, %64, %cst_29 [0] : vector<16x32xf32> to vector<32xf32>
    %66 = vector.shape_cast %65 : vector<32xf32> to vector<1x32xf32>
    %cst_30 = arith.constant 1.600000e+01 : f32
    %67 = vector.broadcast %cst_30 : f32 to vector<1x32xf32>
    %68 = arith.divf %66, %67 : vector<1x32xf32>
    %69 = vector.broadcast %61 : vector<1x32xf32> to vector<16x32xf32>
    %70 = arith.subf %55, %69 : vector<16x32xf32>
    %cst_31 = arith.constant 9.99999974E-6 : f32
    %71 = vector.broadcast %cst_31 : f32 to vector<1x32xf32>
    %72 = arith.addf %68, %71 : vector<1x32xf32>
    %73 = math.rsqrt %72 : vector<1x32xf32>
    %74 = vector.broadcast %73 : vector<1x32xf32> to vector<16x32xf32>
    %75 = arith.mulf %70, %74 : vector<16x32xf32>
    %76 = vector.broadcast %56 : vector<1x32xf32> to vector<16x32xf32>
    %77 = arith.mulf %75, %76 : vector<16x32xf32>
    %78 = vector.broadcast %57 : vector<1x32xf32> to vector<16x32xf32>
    %79 = arith.addf %77, %78 : vector<16x32xf32>
    %cst_32 = arith.constant 0.000000e+00 : f32
    %80 = vector.broadcast %cst_32 : f32 to vector<16x32xf32>
    %81 = arith.maximumf %79, %80 : vector<16x32xf32>
    %c0_33 = arith.constant 0 : index
    %c0_34 = arith.constant 0 : index
    %82 = vector.load %arg7[%c0_33, %c0_34] : memref<32x8xf32, #tpu.memory_space<vmem>>, vector<32x8xf32>
    %cst_35 = arith.constant dense<0.000000e+00> : vector<16x8xf32>
    %83 = tpu.matmul %81, %82, %cst_35 {dimension_numbers = #tpu.dot_dimension_numbers<[1], [0], [0], [1], [0, 0, 1, 1], [], []>} : vector<16x32xf32>, vector<32x8xf32>, vector<16x8xf32> -> vector<16x8xf32>
    %c2 = arith.constant 2 : index
    %c0_36 = arith.constant 0 : index
    %84 = vector.load %arg8[%c2, %c0_36] : memref<4x32xf32, #tpu.memory_space<vmem>>, vector<1x8xf32>
    %c3 = arith.constant 3 : index
    %c0_37 = arith.constant 0 : index
    %85 = vector.load %arg8[%c3, %c0_37] : memref<4x32xf32, #tpu.memory_space<vmem>>, vector<1x8xf32>
    %cst_38 = arith.constant dense<0.000000e+00> : vector<8xf32>
    %86 = vector.multi_reduction <add>, %83, %cst_38 [0] : vector<16x8xf32> to vector<8xf32>
    %87 = vector.shape_cast %86 : vector<8xf32> to vector<1x8xf32>
    %cst_39 = arith.constant 1.600000e+01 : f32
    %88 = vector.broadcast %cst_39 : f32 to vector<1x8xf32>
    %89 = arith.divf %87, %88 : vector<1x8xf32>
    %90 = vector.broadcast %89 : vector<1x8xf32> to vector<16x8xf32>
    %91 = arith.subf %83, %90 : vector<16x8xf32>
    %92 = arith.mulf %91, %91 : vector<16x8xf32>
    %cst_40 = arith.constant dense<0.000000e+00> : vector<8xf32>
    %93 = vector.multi_reduction <add>, %92, %cst_40 [0] : vector<16x8xf32> to vector<8xf32>
    %94 = vector.shape_cast %93 : vector<8xf32> to vector<1x8xf32>
    %cst_41 = arith.constant 1.600000e+01 : f32
    %95 = vector.broadcast %cst_41 : f32 to vector<1x8xf32>
    %96 = arith.divf %94, %95 : vector<1x8xf32>
    %97 = vector.broadcast %89 : vector<1x8xf32> to vector<16x8xf32>
    %98 = arith.subf %83, %97 : vector<16x8xf32>
    %cst_42 = arith.constant 9.99999974E-6 : f32
    %99 = vector.broadcast %cst_42 : f32 to vector<1x8xf32>
    %100 = arith.addf %96, %99 : vector<1x8xf32>
    %101 = math.rsqrt %100 : vector<1x8xf32>
    %102 = vector.broadcast %101 : vector<1x8xf32> to vector<16x8xf32>
    %103 = arith.mulf %98, %102 : vector<16x8xf32>
    %104 = vector.broadcast %84 : vector<1x8xf32> to vector<16x8xf32>
    %105 = arith.mulf %103, %104 : vector<16x8xf32>
    %106 = vector.broadcast %85 : vector<1x8xf32> to vector<16x8xf32>
    %107 = arith.addf %105, %106 : vector<16x8xf32>
    %cst_43 = arith.constant 0.000000e+00 : f32
    %108 = vector.broadcast %cst_43 : f32 to vector<16x8xf32>
    %109 = arith.maximumf %107, %108 : vector<16x8xf32>
    %c0_44 = arith.constant 0 : index
    %c0_45 = arith.constant 0 : index
    %110 = vector.load %arg9[%c0_44, %c0_45] : memref<16x8xf32, #tpu.memory_space<vmem>>, vector<16x8xf32>
    tpu.vector_store %arg9[%c0_44, %c0_45], %109 {strides = array<i32>} : memref<16x8xf32, #tpu.memory_space<vmem>>, vector<16x8xf32>,
    return
  }
}

</mosaic_0001>

<llo_original>
// kernel: forward.1
$region0: #{forward.1}
  #allocation0 [shape = 'u32[]', space=smem, size = 0x4, offset = 0x4, fixed_abs, tag = 'smem constant byte address 0x4 - core index']
  #allocation1 [shape = 'u32[72,128]{1,0:T(1,128)}', space=vmem, size = 0x9000, scoped, tag = 'internal scratch']
  %s0 = inlined_call_operand.hbm [shape: f32[16,16], index: 0, kind: input, shape index: {}]
  %s1 = inlined_call_operand.hbm [shape: f32[16,64], index: 1, kind: input, shape index: {}]
  %s2 = inlined_call_operand.hbm [shape: f32[16,32], index: 2, kind: input, shape index: {}]
  %s3 = inlined_call_operand.hbm [shape: f32[32,4], index: 3, kind: input, shape index: {}]
  %s4 = inlined_call_operand.hbm [shape: f32[4,32], index: 4, kind: input, shape index: {}]
  %s5 = inlined_call_operand.hbm [shape: f32[64,36], index: 5, kind: input, shape index: {}]
  %s6 = inlined_call_operand.hbm [shape: f32[4,32], index: 6, kind: input, shape index: {}]
  %s7 = inlined_call_operand.hbm [shape: f32[32,8], index: 7, kind: input, shape index: {}]
  %s8 = inlined_call_operand.vmem [shape: f32[4,32], index: 8, kind: input, shape index: {}]
  %s9 = inlined_call_operand.vmem [shape: f32[16,8], index: 9, kind: output, shape index: {}]
  %s10 = sld [smem:[#allocation0]]
  $region78: #{forward.1} parent=0
    _
  %s12 = ssub.s32 1, %s10
  %s13 = scalar_select 0, %s12, %s10
  $region1: #{forward.1} parent=0
    #allocation2 [shape = 'u8[8192]{0}', space=vmem, size = 0x2000, scoped, tag = 'input window, operand 0, single buffered']
    #allocation3 [shape = 's32[1]{0}', space=sflag, size = 0x4, scoped, tag = 'scoped memory for forward.1']
    #allocation4 [shape = 'u8[8192]{0}', space=vmem, size = 0x2000, scoped, tag = 'input window, operand 1, single buffered']
    #allocation5 [shape = 's32[1]{0}', space=sflag, size = 0x4, scoped, tag = 'scoped memory for forward.1']
    #allocation6 [shape = 'u8[8192]{0}', space=vmem, size = 0x2000, scoped, tag = 'input window, operand 2, single buffered']
    #allocation7 [shape = 'u8[16384]{0}', space=vmem, size = 0x4000, scoped, tag = 'input window, operand 3, single buffered']
    #allocation8 [shape = 's32[1]{0}', space=sflag, size = 0x4, scoped, tag = 'scoped memory for forward.1']
    #allocation9 [shape = 'u8[2048]{0}', space=vmem, size = 0x800, scoped, tag = 'input window, operand 4, single buffered']
    #allocation10 [shape = 'u8[32768]{0}', space=vmem, size = 0x8000, scoped, tag = 'input window, operand 5, single buffered']
    #allocation11 [shape = 's32[1]{0}', space=sflag, size = 0x4, scoped, tag = 'scoped memory for forward.1']
    #allocation12 [shape = 'u8[2048]{0}', space=vmem, size = 0x800, scoped, tag = 'input window, operand 6, single buffered']
    #allocation13 [shape = 'u8[16384]{0}', space=vmem, size = 0x4000, scoped, tag = 'input window, operand 7, single buffered']
    #allocation14 [shape = 's32[1]{0}', space=sflag, size = 0x4, scoped, tag = 'scoped memory for forward.1']
    %14 = vsyncpa [#allocation3], 0
    %15 = vsyncpa [#allocation5], 0
    %16 = vsyncpa [#allocation8], 0
    %17 = vsyncpa [#allocation11], 0
    %18 = vsyncpa [#allocation14], 0
    // Predicated region
    $region2: #{forward.1} parent=1 // pred_check
      _
    $region3: #{forward.1} parent=1 // pred_check_branch
      %20 = sbr.rel (0) target = $region5
    $region4: #{forward.1} parent=1 // pred_region
      %22 = vsyncadd [#allocation3], 0
      %s23 = sshll.u32 %s0, 4
      %s24 = int_to_ptr.hbm [resolvable:$true] %s23
      %s25 = sshll.u32 [#allocation2], 4
      %s26 = int_to_ptr.vmem [resolvable:$true] %s25
      %31 = dma.hbm_to_vmem [thread:$0]  %s24, 256, %s26, [#allocation3], 128, 128, 8
    $region5: #{forward.1} parent=1 // pred_fallthru
      _
    // Predicated region
    $region6: #{forward.1} parent=1 // pred_check
      _
    $region7: #{forward.1} parent=1 // pred_check_branch
      %33 = sbr.rel (0) target = $region9
    $region8: #{forward.1} parent=1 // pred_region
      %35 = vsyncadd [#allocation5], 0
      %s36 = sshll.u32 %s1, 4
      %s37 = int_to_ptr.hbm [resolvable:$true] %s36
      %s38 = sshll.u32 [#allocation4], 4
      %s39 = int_to_ptr.vmem [resolvable:$true] %s38
      %44 = dma.hbm_to_vmem [thread:$0]  %s37, 256, %s39, [#allocation5], 128, 128, 8
    $region9: #{forward.1} parent=1 // pred_fallthru
      _
    // Predicated region
    $region10: #{forward.1} parent=1 // pred_check
      _
    $region11: #{forward.1} parent=1 // pred_check_branch
      %46 = sbr.rel (0) target = $region13
    $region12: #{forward.1} parent=1 // pred_region
      %48 = vsyncadd [#allocation5], 0
      %s49 = sshll.u32 %s2, 4
      %s50 = int_to_ptr.hbm [resolvable:$true] %s49
      %s51 = sshll.u32 [#allocation6], 4
      %s52 = int_to_ptr.vmem [resolvable:$true] %s51
      %57 = dma.hbm_to_vmem [thread:$0]  %s50, 256, %s52, [#allocation5], 128, 128, 8
    $region13: #{forward.1} parent=1 // pred_fallthru
      _
    // Predicated region
    $region14: #{forward.1} parent=1 // pred_check
      _
    $region15: #{forward.1} parent=1 // pred_check_branch
      %59 = sbr.rel (0) target = $region17
    $region16: #{forward.1} parent=1 // pred_region
      %61 = vsyncadd [#allocation8], 0
      %s62 = sshll.u32 %s3, 4
      %s63 = int_to_ptr.hbm [resolvable:$true] %s62
      %s64 = sshll.u32 [#allocation7], 4
      %s65 = int_to_ptr.vmem [resolvable:$true] %s64
      %70 = dma.hbm_to_vmem [thread:$0]  %s63, 512, %s65, [#allocation8], 128, 128, 8
    $region17: #{forward.1} parent=1 // pred_fallthru
      _
    // Predicated region
    $region18: #{forward.1} parent=1 // pred_check
      _
    $region19: #{forward.1} parent=1 // pred_check_branch
      %72 = sbr.rel (0) target = $region21
    $region20: #{forward.1} parent=1 // pred_region
      %74 = vsyncadd [#allocation8], 0
      %s76 = sshll.u32 %s4, 4
      %s77 = int_to_ptr.hbm [resolvable:$true] %s76
      %s78 = sshll.u32 [#allocation9], 4
      %s79 = int_to_ptr.vmem [resolvable:$true] %s78
      %81 = dma.hbm_to_vmem [thread:$0]  %s77, 64, %s79, [#allocation8]
    $region21: #{forward.1} parent=1 // pred_fallthru
      _
    // Predicated region
    $region22: #{forward.1} parent=1 // pred_check
      _
    $region23: #{forward.1} parent=1 // pred_check_branch
      %83 = sbr.rel (0) target = $region25
    $region24: #{forward.1} parent=1 // pred_region
      %85 = vsyncadd [#allocation11], 0
      %s86 = sshll.u32 %s5, 4
      %s87 = int_to_ptr.hbm [resolvable:$true] %s86
      %s88 = sshll.u32 [#allocation10], 4
      %s89 = int_to_ptr.vmem [resolvable:$true] %s88
      %94 = dma.hbm_to_vmem [thread:$0]  %s87, 1024, %s89, [#allocation11], 128, 128, 8
    $region25: #{forward.1} parent=1 // pred_fallthru
      _
    // Predicated region
    $region26: #{forward.1} parent=1 // pred_check
      _
    $region27: #{forward.1} parent=1 // pred_check_branch
      %96 = sbr.rel (0) target = $region29
    $region28: #{forward.1} parent=1 // pred_region
      %98 = vsyncadd [#allocation11], 0
      %s100 = sshll.u32 %s6, 4
      %s101 = int_to_ptr.hbm [resolvable:$true] %s100
      %s102 = sshll.u32 [#allocation12], 4
      %s103 = int_to_ptr.vmem [resolvable:$true] %s102
      %105 = dma.hbm_to_vmem [thread:$0]  %s101, 64, %s103, [#allocation11]
    $region29: #{forward.1} parent=1 // pred_fallthru
      _
    // Predicated region
    $region30: #{forward.1} parent=1 // pred_check
      _
    $region31: #{forward.1} parent=1 // pred_check_branch
      %107 = sbr.rel (0) target = $region33
    $region32: #{forward.1} parent=1 // pred_region
      %109 = vsyncadd [#allocation14], 0
      %s110 = sshll.u32 %s7, 4
      %s111 = int_to_ptr.hbm [resolvable:$true] %s110
      %s112 = sshll.u32 [#allocation13], 4
      %s113 = int_to_ptr.vmem [resolvable:$true] %s112
      %118 = dma.hbm_to_vmem [thread:$0]  %s111, 512, %s113, [#allocation14], 128, 128, 8
    $region33: #{forward.1} parent=1 // pred_fallthru
      _
    // Predicated region
    $region34: #{forward.1} parent=1 // pred_check
      _
    $region35: #{forward.1} parent=1 // pred_check_branch
      %120 = sbr.rel (0) target = $region37
    $region36: #{forward.1} parent=1 // pred_region
      _
    $region37: #{forward.1} parent=1 // pred_fallthru
      _
    // Predicated region
    $region38: #{forward.1} parent=1 // pred_check
      _
    $region39: #{forward.1} parent=1 // pred_check_branch
      %122 = sbr.rel (0) target = $region41
    $region40: #{forward.1} parent=1 // pred_region
      %124 = dma.done [#allocation3], 256
    $region41: #{forward.1} parent=1 // pred_fallthru
      _
    // Predicated region
    $region42: #{forward.1} parent=1 // pred_check
      _
    $region43: #{forward.1} parent=1 // pred_check_branch
      %126 = sbr.rel (0) target = $region45
    $region44: #{forward.1} parent=1 // pred_region
      %128 = dma.done [#allocation5], 256
    $region45: #{forward.1} parent=1 // pred_fallthru
      _
    // Predicated region
    $region46: #{forward.1} parent=1 // pred_check
      _
    $region47: #{forward.1} parent=1 // pred_check_branch
      %130 = sbr.rel (0) target = $region49
    $region48: #{forward.1} parent=1 // pred_region
      %132 = dma.done [#allocation5], 256
    $region49: #{forward.1} parent=1 // pred_fallthru
      _
    // Predicated region
    $region50: #{forward.1} parent=1 // pred_check
      _
    $region51: #{forward.1} parent=1 // pred_check_branch
      %134 = sbr.rel (0) target = $region53
    $region52: #{forward.1} parent=1 // pred_region
      %136 = dma.done [#allocation8], 512
    $region53: #{forward.1} parent=1 // pred_fallthru
      _
    // Predicated region
    $region54: #{forward.1} parent=1 // pred_check
      _
    $region55: #{forward.1} parent=1 // pred_check_branch
      %138 = sbr.rel (0) target = $region57
    $region56: #{forward.1} parent=1 // pred_region
      %140 = dma.done [#allocation8], 64
    $region57: #{forward.1} parent=1 // pred_fallthru
      _
    // Predicated region
    $region58: #{forward.1} parent=1 // pred_check
      _
    $region59: #{forward.1} parent=1 // pred_check_branch
      %142 = sbr.rel (0) target = $region61
    $region60: #{forward.1} parent=1 // pred_region
      %144 = dma.done [#allocation11], 1024
    $region61: #{forward.1} parent=1 // pred_fallthru
      _
    // Predicated region
    $region62: #{forward.1} parent=1 // pred_check
      _
    $region63: #{forward.1} parent=1 // pred_check_branch
      %146 = sbr.rel (0) target = $region65
    $region64: #{forward.1} parent=1 // pred_region
      %148 = dma.done [#allocation11], 64
    $region65: #{forward.1} parent=1 // pred_fallthru
      _
    // Predicated region
    $region66: #{forward.1} parent=1 // pred_check
      _
    $region67: #{forward.1} parent=1 // pred_check_branch
      %150 = sbr.rel (0) target = $region69
    $region68: #{forward.1} parent=1 // pred_region
      %152 = dma.done [#allocation14], 512
    $region69: #{forward.1} parent=1 // pred_fallthru
      _
    %v153 = vld [vmem:[#allocation2] sm:$0xff]
    %v154 = vld [vmem:[#allocation2 + $0x8] sm:$0xff]
    %v155 = vld [vmem:[#allocation6] sm:$0xff]
    %v156 = vld [vmem:[#allocation6 + $0x8] sm:$0xff]
    %vm157 = vcmask 130048
    %v159 = vsel %vm157, %v153, 0
    %v162 = vsel %vm157, %v154, 0
    %164 = vmatpush.msra.mxu0 0.0
    %165 = vmatpush.msra.mxu0 0.0
    %166 = vmatpush.msra.mxu0 0.0
    %167 = vmatpush.msra.mxu0 0.0
    %168 = vmatpush.msra.mxu0 0.0
    %169 = vmatpush.msra.mxu0 0.0
    %170 = vmatpush.msra.mxu0 0.0
    %171 = vmatpush.msra.mxu0 0.0
    %172 = vmatpush.msra.mxu0 0.0
    %173 = vmatpush.msra.mxu0 0.0
    %174 = vmatpush.msra.mxu0 0.0
    %175 = vmatpush.msra.mxu0 0.0
    %176 = vmatpush.msra.mxu0 0.0
    %177 = vmatpush.msra.mxu0 0.0
    %178 = vmatpush.msra.mxu0 %v156
    %179 = vmatpush.msra.mxu0 %v155
    %180 = vmatmul.f32.gmra.mxu0 %v159
    %v181 = vpop.f32.mrf.mxu0
    %v182 = vadd.f32 0.0, %v181
    %183 = vmatmul.f32.gmra.mxu0 %v162
    %v184 = vpop.f32.mrf.mxu0
    %v185 = vadd.f32 0.0, %v184
    %186 = vdwg.mxu0
    %v187 = vld [vmem:[#allocation7] sm:$0xff]
    %v188 = vld [vmem:[#allocation7 + $0x8] sm:$0xff]
    %v189 = vld [vmem:[#allocation7 + $0x10] sm:$0xff]
    %v190 = vld [vmem:[#allocation7 + $0x18] sm:$0xff]
    %vm191 = vcmask 261120
    %v193 = vsel %vm191, %v182, 0
    %v196 = vsel %vm191, %v185, 0
    %198 = vmatpush.msra.mxu0 0.0
    %199 = vmatpush.msra.mxu0 0.0
    %200 = vmatpush.msra.mxu0 0.0
    %201 = vmatpush.msra.mxu0 0.0
    %202 = vmatpush.msra.mxu0 0.0
    %203 = vmatpush.msra.mxu0 0.0
    %204 = vmatpush.msra.mxu0 0.0
    %205 = vmatpush.msra.mxu0 0.0
    %206 = vmatpush.msra.mxu0 0.0
    %207 = vmatpush.msra.mxu0 0.0
    %208 = vmatpush.msra.mxu0 0.0
    %209 = vmatpush.msra.mxu0 0.0
    %210 = vmatpush.msra.mxu0 %v190
    %211 = vmatpush.msra.mxu0 %v189
    %212 = vmatpush.msra.mxu0 %v188
    %213 = vmatpush.msra.mxu0 %v187
    %214 = vmatmul.f32.gmra.mxu0 %v193
    %v215 = vpop.f32.mrf.mxu0
    %v216 = vadd.f32 0.0, %v215
    %217 = vmatmul.f32.gmra.mxu0 %v196
    %v218 = vpop.f32.mrf.mxu0
    %v219 = vadd.f32 0.0, %v218
    %220 = vdwg.mxu0
    %v221 = vld [vmem:[#allocation9] sm:$0xf]
    %v223 = vsel %vm191, %v221, 0
    %225 = vmatpush.xpose.msra.mxu0 0.0
    %226 = vmatpush.xpose.msra.mxu0 0.0
    %227 = vmatpush.xpose.msra.mxu0 0.0
    %228 = vmatpush.xpose.msra.mxu0 0.0
    %229 = vmatpush.xpose.msra.mxu0 0.0
    %230 = vmatpush.xpose.msra.mxu0 0.0
    %231 = vmatpush.xpose.msra.mxu0 0.0
    %232 = vmatpush.xpose.msra.mxu0 0.0
    %233 = vmatpush.xpose.msra.mxu0 0.0
    %234 = vmatpush.xpose.msra.mxu0 0.0
    %235 = vmatpush.xpose.msra.mxu0 0.0
    %236 = vmatpush.xpose.msra.mxu0 0.0
    %237 = vmatpush.xpose.msra.mxu0 0.0
    %238 = vmatpush.xpose.msra.mxu0 0.0
    %239 = vmatpush.xpose.msra.mxu0 %v196
    %240 = vmatpush.xpose.msra.mxu0 %v193
    %241 = vmatmul.f32.gmra.mxu0 %v223
    %v242 = vpop.f32.mrf.mxu0
    %v243 = vadd.f32 0.0, %v242
    %244 = vdwg.mxu0
    %246 = vset.pattern.permute.xlu0 0
    %247 = vperm.xlu0 %246, %v216
    %v248 = vpop.permute.xlu0 %247
    %251 = vset.pattern.permute.xlu0 0
    %252 = vperm.xlu0 %251, %v219
    %v253 = vpop.permute.xlu0 %252
    %v255 = vperm.slane %v243, 0
    %v256 = vadd.f32 %v248, %v255
    %v257 = vadd.f32 %v253, %v255
    %258 = vset.pattern.permute.xlu0 1
    %259 = vperm.xlu0 %258, %v216
    %v260 = vpop.permute.xlu0 %259
    %262 = vset.pattern.permute.xlu0 1
    %263 = vperm.xlu0 %262, %v219
    %v264 = vpop.permute.xlu0 %263
    %v266 = vperm.slane %v243, 1
    %v267 = vadd.f32 %v260, %v266
    %v268 = vadd.f32 %v264, %v266
    %269 = vset.pattern.permute.xlu0 2
    %270 = vperm.xlu0 %269, %v216
    %v271 = vpop.permute.xlu0 %270
    %273 = vset.pattern.permute.xlu0 2
    %274 = vperm.xlu0 %273, %v219
    %v275 = vpop.permute.xlu0 %274
    %v277 = vperm.slane %v243, 2
    %v278 = vadd.f32 %v271, %v277
    %v279 = vadd.f32 %v275, %v277
    %280 = vset.pattern.permute.xlu0 3
    %281 = vperm.xlu0 %280, %v216
    %v282 = vpop.permute.xlu0 %281
    %284 = vset.pattern.permute.xlu0 3
    %285 = vperm.xlu0 %284, %v219
    %v286 = vpop.permute.xlu0 %285
    %v288 = vperm.slane %v243, 3
    %v289 = vadd.f32 %v282, %v288
    %v290 = vadd.f32 %v286, %v288
    %293 = vrot.lane.b32.xlu0 %v267, 16
    %v294 = vpop.permute.xlu0 %293
    %295 = vrot.lane.b32.xlu0 %v268, 16
    %v296 = vpop.permute.xlu0 %295
    %301 = vrot.lane.b32.xlu0 %v278, 32
    %v302 = vpop.permute.xlu0 %301
    %303 = vrot.lane.b32.xlu0 %v279, 32
    %v304 = vpop.permute.xlu0 %303
    %309 = vrot.lane.b32.xlu0 %v289, 48
    %v310 = vpop.permute.xlu0 %309
    %311 = vrot.lane.b32.xlu0 %v290, 48
    %v312 = vpop.permute.xlu0 %311
    %v315 = vsel %vm157, %v256, %v294
    %v316 = vsel %vm157, %v257, %v296
    %v317 = vsel %vm191, %v315, %v302
    %v318 = vsel %vm191, %v316, %v304
    %vm319 = vcmask 392192
    %v320 = vsel %vm319, %v317, %v310
    %v321 = vsel %vm319, %v318, %v312
    %vm322 = vcmp.ge.f32.partialorder %v320, 0.0
    %vm323 = vcmp.ge.f32.partialorder %v321, 0.0
    %v324 = vmul.f32 %v320, 0.2
    %v325 = vmul.f32 %v321, 0.2
    %v326 = vsel %vm322, %v320, %v324
    %v327 = vsel %vm323, %v321, %v325
    %v328 = vld [vmem:[#allocation4] sm:$0xff]
    %v329 = vld [vmem:[#allocation4 + $0x8] sm:$0xff]
    %vm330 = vcmp.gt.f32.partialorder %v328, 0.0
    %vm331 = vcmp.gt.f32.partialorder %v329, 0.0
    %v332 = vsel %vm330, %v326, -1e+30
    %v333 = vsel %vm331, %v327, -1e+30
    %vm334 = vcmask 523264
    %v335 = vsel %vm334, %v332, -inf
    %336 = vmax.xlane.f32.xlu0 %v335
    %v337 = vpop.xlane.xlu0 %336
    %v338 = vsel %vm334, %v333, -inf
    %339 = vmax.xlane.f32.xlu0 %v338
    %v340 = vpop.xlane.xlu0 %339
    %v341 = vsub.f32 %v332, %v337
    %v342 = vsub.f32 %v333, %v340
    %v343 = vmul.f32 %v341, 1.442695
    %v344 = vpow.pop %v343
    %v345 = vmul.f32 %v342, 1.442695
    %v346 = vpow.pop %v345
    %v347 = vsel %vm191, %v182, 1.0
    %v348 = vsel %vm191, %v185, 1.0
    %v349 = vld [vmem:[#allocation10] sm:$0xff]
    %v350 = vld [vmem:[#allocation10 + $0x8] sm:$0xff]
    %v351 = vld [vmem:[#allocation10 + $0x10] sm:$0xff]
    %v352 = vld [vmem:[#allocation10 + $0x18] sm:$0xff]
    %v353 = vld [vmem:[#allocation10 + $0x20] sm:$0xff]
    %v354 = vld [vmem:[#allocation10 + $0x28] sm:$0xff]
    %v355 = vld [vmem:[#allocation10 + $0x30] sm:$0xff]
    %v356 = vld [vmem:[#allocation10 + $0x38] sm:$0xff]
    %v357 = vmul.f32 %v347, %v349
    %v358 = vmul.f32 %v348, %v350
    %v359 = vmul.f32 %v347, %v351
    %v360 = vmul.f32 %v348, %v352
    %v361 = vmul.f32 %v347, %v353
    %v362 = vmul.f32 %v348, %v354
    %v363 = vmul.f32 %v347, %v355
    %v364 = vmul.f32 %v348, %v356
    %v366 = vsel %vm334, %v344, 0
    %v369 = vsel %vm334, %v346, 0
    %371 = vmatpush.msra.mxu0 0.0
    %372 = vmatpush.msra.mxu0 0.0
    %373 = vmatpush.msra.mxu0 0.0
    %374 = vmatpush.msra.mxu0 0.0
    %375 = vmatpush.msra.mxu0 0.0
    %376 = vmatpush.msra.mxu0 0.0
    %377 = vmatpush.msra.mxu0 0.0
    %378 = vmatpush.msra.mxu0 0.0
    %379 = vmatpush.msra.mxu0 %v364
    %380 = vmatpush.msra.mxu0 %v363
    %381 = vmatpush.msra.mxu0 %v362
    %382 = vmatpush.msra.mxu0 %v361
    %383 = vmatpush.msra.mxu0 %v360
    %384 = vmatpush.msra.mxu0 %v359
    %385 = vmatpush.msra.mxu0 %v358
    %386 = vmatpush.msra.mxu0 %v357
    %387 = vmatmul.f32.gmra.mxu0 %v366
    %v388 = vpop.f32.mrf.mxu0
    %v389 = vadd.f32 0.0, %v388
    %390 = vmatmul.f32.gmra.mxu0 %v369
    %v391 = vpop.f32.mrf.mxu0
    %v392 = vadd.f32 0.0, %v391
    %393 = vdwg.mxu0
    %v394 = vrcp.pop %v389
    %v395 = vmul.f32 %v389, %v394
    %v396 = vsub.f32 1.0, %v395
    %v397 = vmul.f32 %v394, %v396
    %v398 = vadd.f32 %v394, %v397
    %vm399 = vweird.f32 %v389
    %vm400 = vweird.f32 %v394
    %vm401 = vmor %vm399, %vm400
    %v402 = vsel %vm401, %v394, %v398
    %v403 = vand.u32 2147483647, %v389
    %vm404 = vcmp.eq.f32.partialorder %v403, 8.507059e+37
    %v405 = vand.u32 %v389, 2147483648
    %v406 = vor.u32 1.1754944e-38, %v405
    %v407 = vsel %vm404, %v406, %v402
    %v408 = vmul.f32 1.0, %v407
    %v409 = vrcp.pop %v392
    %v410 = vmul.f32 %v392, %v409
    %v411 = vsub.f32 1.0, %v410
    %v412 = vmul.f32 %v409, %v411
    %v413 = vadd.f32 %v409, %v412
    %vm414 = vweird.f32 %v392
    %vm415 = vweird.f32 %v409
    %vm416 = vmor %vm414, %vm415
    %v417 = vsel %vm416, %v409, %v413
    %v418 = vand.u32 2147483647, %v392
    %vm419 = vcmp.eq.f32.partialorder %v418, 8.507059e+37
    %v420 = vand.u32 %v392, 2147483648
    %v421 = vor.u32 1.1754944e-38, %v420
    %v422 = vsel %vm419, %v421, %v417
    %v423 = vmul.f32 1.0, %v422
    %v424 = vld [vmem:[#allocation12] sm:$0xf]
    %427 = vrot.lane.b32.xlu0 %v408, 96
    %v428 = vpop.permute.xlu0 %427
    %429 = vrot.lane.b32.xlu0 %v423, 96
    %v430 = vpop.permute.xlu0 %429
    %vm431 = vcmask 31744
    %v432 = vsel %vm431, %v428, 0
    %v434 = vsel %vm431, %v430, 0
    %vm436 = vcmask 1043456
    %v438 = vsel %vm436, %v424, 0
    %440 = vmatpush.msra.mxu0 0.0
    %441 = vmatpush.msra.mxu0 0.0
    %442 = vmatpush.msra.mxu0 0.0
    %443 = vmatpush.msra.mxu0 0.0
    %444 = vmatpush.msra.mxu0 0.0
    %445 = vmatpush.msra.mxu0 0.0
    %446 = vmatpush.msra.mxu0 0.0
    %447 = vmatpush.msra.mxu0 0.0
    %448 = vmatpush.msra.mxu0 0.0
    %449 = vmatpush.msra.mxu0 0.0
    %450 = vmatpush.msra.mxu0 0.0
    %451 = vmatpush.msra.mxu0 0.0
    %452 = vmatpush.msra.mxu0 0.0
    %453 = vmatpush.msra.mxu0 0.0
    %454 = vmatpush.msra.mxu0 0.0
    %455 = vmatpush.msra.mxu0 %v438
    %456 = vmatmul.f32.gmra.mxu0 %v432
    %v457 = vpop.f32.mrf.mxu0
    %v458 = vadd.f32 0.0, %v457
    %459 = vmatmul.f32.gmra.mxu0 %v434
    %v460 = vpop.f32.mrf.mxu0
    %v461 = vadd.f32 0.0, %v460
    %462 = vdwg.mxu0
    %v463 = vmul.f32 %v389, %v458
    %v464 = vmul.f32 %v392, %v461
    %v465 = vld [vmem:[%s8] sm:$0x1]
    %v466 = vld [vmem:[%s8 + $0x1] sm:$0x1]
    %v467 = vsel %vm191, %v463, 0.0
    %v468 = vsel %vm191, %v464, 0.0
    %v469 = vadd.f32 %v467, %v468
    %v470 = vrot.slane %v469, 4
    %v471 = vadd.f32 %v469, %v470
    %v472 = vrot.slane %v471, 2
    %v473 = vadd.f32 %v471, %v472
    %v474 = vrot.slane %v473, 1
    %v475 = vadd.f32 %v473, %v474
    %v476 = vrcp.pop 16.0
    %v477 = vmul.f32 16.0, %v476
    %v478 = vsub.f32 1.0, %v477
    %v479 = vmul.f32 %v476, %v478
    %v480 = vadd.f32 %v476, %v479
    %vm481 = vweird.f32 %v476
    %v482 = vsel %vm481, %v476, %v480
    %v483 = vmul.f32 %v475, %v482
    %v484 = vsub.f32 %v463, %v483
    %v485 = vsub.f32 %v464, %v483
    %v486 = vmul.f32 %v484, %v484
    %v487 = vmul.f32 %v485, %v485
    %v488 = vsel %vm191, %v486, 0.0
    %v489 = vsel %vm191, %v487, 0.0
    %v490 = vadd.f32 %v488, %v489
    %v491 = vrot.slane %v490, 4
    %v492 = vadd.f32 %v490, %v491
    %v493 = vrot.slane %v492, 2
    %v494 = vadd.f32 %v492, %v493
    %v495 = vrot.slane %v494, 1
    %v496 = vadd.f32 %v494, %v495
    %v497 = vmul.f32 %v496, %v482
    %v498 = vadd.f32 %v497, 1e-05
    %v499 = vrsqrt.pop %v498
    %v500 = vmul.f32 %v499, %v498
    %v501 = vmul.f32 %v500, %v499
    %v502 = vmul.f32 0.5, %v501
    %v503 = vsub.f32 1.5, %v502
    %v504 = vmul.f32 %v499, %v503
    %vm505 = vweird.f32 %v498
    %vm506 = vweird.f32 %v499
    %vm507 = vmor %vm505, %vm506
    %v508 = vsel %vm507, %v499, %v504
    %v509 = vmul.f32 %v484, %v508
    %v510 = vmul.f32 %v485, %v508
    %v511 = vperm.slane %v465, 0
    %v512 = vmul.f32 %v509, %v511
    %v513 = vmul.f32 %v510, %v511
    %v514 = vperm.slane %v466, 0
    %v515 = vadd.f32 %v512, %v514
    %v516 = vadd.f32 %v513, %v514
    %v517 = vmax.f32 %v515, 0.0
    %v518 = vmax.f32 %v516, 0.0
    %v519 = vld [vmem:[#allocation13] sm:$0xff]
    %v520 = vld [vmem:[#allocation13 + $0x8] sm:$0xff]
    %v521 = vld [vmem:[#allocation13 + $0x10] sm:$0xff]
    %v522 = vld [vmem:[#allocation13 + $0x18] sm:$0xff]
    %v524 = vsel %vm191, %v517, 0
    %v527 = vsel %vm191, %v518, 0
    %529 = vmatpush.msra.mxu0 0.0
    %530 = vmatpush.msra.mxu0 0.0
    %531 = vmatpush.msra.mxu0 0.0
    %532 = vmatpush.msra.mxu0 0.0
    %533 = vmatpush.msra.mxu0 0.0
    %534 = vmatpush.msra.mxu0 0.0
    %535 = vmatpush.msra.mxu0 0.0
    %536 = vmatpush.msra.mxu0 0.0
    %537 = vmatpush.msra.mxu0 0.0
    %538 = vmatpush.msra.mxu0 0.0
    %539 = vmatpush.msra.mxu0 0.0
    %540 = vmatpush.msra.mxu0 0.0
    %541 = vmatpush.msra.mxu0 %v522
    %542 = vmatpush.msra.mxu0 %v521
    %543 = vmatpush.msra.mxu0 %v520
    %544 = vmatpush.msra.mxu0 %v519
    %545 = vmatmul.f32.gmra.mxu0 %v524
    %v546 = vpop.f32.mrf.mxu0
    %v547 = vadd.f32 0.0, %v546
    %548 = vmatmul.f32.gmra.mxu0 %v527
    %v549 = vpop.f32.mrf.mxu0
    %v550 = vadd.f32 0.0, %v549
    %551 = vdwg.mxu0
    %v552 = vld [vmem:[%s8 + $0x2] sm:$0x1]
    %v553 = vld [vmem:[%s8 + $0x3] sm:$0x1]
    %vm554 = vcmask 64512
    %v555 = vsel %vm554, %v547, 0.0
    %v556 = vsel %vm554, %v550, 0.0
    %v557 = vadd.f32 %v555, %v556
    %v558 = vrot.slane %v557, 4
    %v559 = vadd.f32 %v557, %v558
    %v560 = vrot.slane %v559, 2
    %v561 = vadd.f32 %v559, %v560
    %v562 = vrot.slane %v561, 1
    %v563 = vadd.f32 %v561, %v562
    %v564 = vmul.f32 %v563, %v482
    %v565 = vsub.f32 %v547, %v564
    %v566 = vsub.f32 %v550, %v564
    %v567 = vmul.f32 %v565, %v565
    %v568 = vmul.f32 %v566, %v566
    %v569 = vsel %vm554, %v567, 0.0
    %v570 = vsel %vm554, %v568, 0.0
    %v571 = vadd.f32 %v569, %v570
    %v572 = vrot.slane %v571, 4
    %v573 = vadd.f32 %v571, %v572
    %v574 = vrot.slane %v573, 2
    %v575 = vadd.f32 %v573, %v574
    %v576 = vrot.slane %v575, 1
    %v577 = vadd.f32 %v575, %v576
    %v578 = vmul.f32 %v577, %v482
    %v579 = vadd.f32 %v578, 1e-05
    %v580 = vrsqrt.pop %v579
    %v581 = vmul.f32 %v580, %v579
    %v582 = vmul.f32 %v581, %v580
    %v583 = vmul.f32 0.5, %v582
    %v584 = vsub.f32 1.5, %v583
    %v585 = vmul.f32 %v580, %v584
    %vm586 = vweird.f32 %v579
    %vm587 = vweird.f32 %v580
    %vm588 = vmor %vm586, %vm587
    %v589 = vsel %vm588, %v580, %v585
    %v590 = vmul.f32 %v565, %v589
    %v591 = vmul.f32 %v566, %v589
    %v592 = vperm.slane %v552, 0
    %v593 = vmul.f32 %v590, %v592
    %v594 = vmul.f32 %v591, %v592
    %v595 = vperm.slane %v553, 0
    %v596 = vadd.f32 %v593, %v595
    %v597 = vadd.f32 %v594, %v595
    %v598 = vmax.f32 %v596, 0.0
    %v599 = vmax.f32 %v597, 0.0
    %600 = vst.msk [vmem:[%s9] sm:$0xff] %vm554, %v598
    %601 = vst.msk [vmem:[%s9 + $0x8] sm:$0xff] %vm554, %v599
    // Predicated region
    $region70: #{forward.1} parent=1 // pred_check
      _
    $region71: #{forward.1} parent=1 // pred_check_branch
      %603 = sbr.rel (0) target = $region73
    $region72: #{forward.1} parent=1 // pred_region
      _
    $region73: #{forward.1} parent=1 // pred_fallthru
      _
    // Predicated region
    $region74: #{forward.1} parent=1 // pred_check
      _
    $region75: #{forward.1} parent=1 // pred_check_branch
      %605 = sbr.rel (0) target = $region77
    $region76: #{forward.1} parent=1 // pred_region
      _
    $region77: #{forward.1} parent=1 // pred_fallthru
      _
    %606 = vsyncpa [#allocation3], 1
    %607 = vsyncpa [#allocation5], 1
    %608 = vsyncpa [#allocation8], 1
    %609 = vsyncpa [#allocation11], 1
    %610 = vsyncpa [#allocation14], 1

</llo_original>
